<compile_context>
chip_gen: v5e
topology: v5e:2x2
jax: 0.10.0
libtpu: 0.0.40
codegen_flags: <defaults>
</compile_context>

<pallas_src>
import functools

import jax
import jax.numpy as jnp
from jax.experimental import pallas as pl
from jax.experimental.pallas import tpu as pltpu

_EPS = 1e-5  # nn.BatchNorm1d default eps


# --------------------------- Pallas kernel -----------------------------------


def _daconv_bn_relu_kernel(x_ref, w_ref, g_ref, beta_ref, o_ref, *, nl_valid):
    """Fused conv-as-one-matmul + BatchNorm1d (batch stats) + ReLU.

    x_ref    : (K*Cin, NLp)       bf16  shifted/im2col input slab (grid-invariant)
    w_ref    : (Cout_tile, K*Cin) bf16  conv weight, taps folded into contraction
    g_ref    : (Cout_tile, 1)     f32   BN gamma
    beta_ref : (Cout_tile, 1)     f32   BN beta
    o_ref    : (Cout_tile, NLp)         lane-dense output (NLp % 128 == 0)
    nl_valid : static number of valid lanes (= N * Lout); the rest is padding
    """
    # Single wide MXU matmul, f32 accumulation.
    y = jnp.dot(w_ref[...], x_ref[...], preferred_element_type=jnp.float32)
    nl_pad = y.shape[-1]
    inv_cnt = 1.0 / float(nl_valid)

    if nl_valid == nl_pad:
        mean = jnp.sum(y, axis=-1, keepdims=True) * inv_cnt
        centered = y - mean
    else:
        valid = jax.lax.broadcasted_iota(jnp.int32, y.shape, 1) < nl_valid
        mean = jnp.sum(jnp.where(valid, y, 0.0), axis=-1, keepdims=True) * inv_cnt
        centered = jnp.where(valid, y - mean, 0.0)

    # Two-pass (centered) variance: y is VMEM-resident, the extra VPU traversal
    # is cheap and avoids the E[y^2] - mean^2 cancellation problem.
    var = jnp.sum(centered * centered, axis=-1, keepdims=True) * inv_cnt
    scale = g_ref[...] * jax.lax.rsqrt(var + _EPS)        # (tile, 1)
    shift = beta_ref[...] - mean * scale                   # (tile, 1)
    # Conv bias is omitted on purpose: it cancels exactly in (y - mean).
    o_ref[...] = jnp.maximum(y * scale + shift, 0.0).astype(o_ref.dtype)


# --------------------------- wrapper ------------------------------------------


def conv1_forward(params, x, *, kernel_size=7, stride=2, padding=3,
                  out_dtype=jnp.float32):
    """Conv1.forward: relu(bn(daconv(x))), fused in one Pallas call.

    x: (N, Cin, L) float32 -> (N, Cout, Lout) out_dtype.
    """
    n, c_in, l = x.shape
    w = params["daconv_w"]
    gamma, beta = params["bn_g"], params["bn_b"]
    c_out = w.shape[0]
    l_out = (l + 2 * padding - kernel_size) // stride + 1
    nl = n * l_out
    kc = kernel_size * c_in

    # ---- layout prep (on the small input only; read once) --------------------
    xp = jnp.pad(x, ((0, 0), (0, 0), (padding, padding)))
    # Shifted-window (im2col) slab, channel-major, taps folded into contraction:
    #   patches[ci*K + k, nn*Lout + t] = xp[nn, ci, t*stride + k]
    gather_idx = (jnp.arange(l_out) * stride)[:, None] + jnp.arange(kernel_size)[None, :]
    win = xp[:, :, gather_idx]                          # (N, Cin, Lout, K)
    patches = (win.transpose(1, 3, 0, 2)                # (Cin, K, N, Lout)
                  .reshape(kc, nl)
                  .astype(jnp.bfloat16))
    # Lane-dense padding: pad the lane axis to a multiple of 128 so every output
    # store is an unmasked full-lane vst (no vst.msk penalty).
    nl_pad = -(-nl // 128) * 128
    if nl_pad != nl:
        patches = jnp.pad(patches, ((0, 0), (0, nl_pad - nl)))

    # Weights: (Cout, Cin, K) -> (Cout, Cin*K), same flattening order as patches.
    w_flat = w.reshape(c_out, kc).astype(jnp.bfloat16)

    # ---- grid: one step on single-TC chips / small Cout; channel tiles only
    # when each tile has enough work to amortize the ~0.35 us per-step cost.
    if c_out <= 256 or c_out % 128 != 0:
        tile_co = c_out
    else:
        tile_co = 128
    num_tiles = c_out // tile_co

    # The im2col slab is grid-invariant (constant index_map): when the grid has
    # more than one step, single-buffer it so it is not held twice in VMEM.
    if num_tiles > 1:
        x_spec = pl.BlockSpec((kc, nl_pad), lambda i: (0, 0),
                              pipeline_mode=pl.Buffered(1))
    else:
        x_spec = pl.BlockSpec((kc, nl_pad), lambda i: (0, 0))

    kernel = functools.partial(_daconv_bn_relu_kernel, nl_valid=nl)
    out = pl.pallas_call(
        kernel,
        out_shape=jax.ShapeDtypeStruct((c_out, nl_pad), out_dtype),
        grid_spec=pltpu.PrefetchScalarGridSpec(
            num_scalar_prefetch=0,
            grid=(num_tiles,),
            in_specs=[
                x_spec,
                pl.BlockSpec((tile_co, kc), lambda i: (i, 0)),
                pl.BlockSpec((tile_co, 1), lambda i: (i, 0)),
                pl.BlockSpec((tile_co, 1), lambda i: (i, 0)),
            ],
            out_specs=pl.BlockSpec((tile_co, nl_pad), lambda i: (i, 0)),
        ),
        compiler_params=pltpu.CompilerParams(
            dimension_semantics=("parallel",),
            vmem_limit_bytes=48 * 1024 * 1024,
        ),
    )(patches, w_flat,
      gamma.reshape(c_out, 1).astype(jnp.float32),
      beta.reshape(c_out, 1).astype(jnp.float32))

    # Drop lane padding and convert channel-major -> PyTorch NCL once, at the end.
    return (out[:, :nl].reshape(c_out, n, l_out)
               .transpose(1, 0, 2).astype(out_dtype))


# --------------------------- parameters & reference ---------------------------


def init_conv1_params(key, in_planes, places, kernel_size):
    kw, kb = jax.random.split(key)
    return {
        "daconv_w": jax.random.normal(kw, (places, in_planes, kernel_size),
                                      jnp.float32) * 0.1,
        # Bias exists in the module, but cancels exactly under batch-stat BN,
        # so the fused kernel does not consume it.
        "daconv_b": jax.random.normal(kb, (places,), jnp.float32) * 0.1,
        "bn_g": jnp.ones((places,), jnp.float32),
        "bn_b": jnp.zeros((places,), jnp.float32),
    }


def _reference(params, x, *, kernel_size, stride, padding):
    """Pure-JAX f32 reference of Conv1.forward (training-mode BN)."""
    y = jax.lax.conv_general_dilated(
        x, params["daconv_w"], window_strides=(stride,),
        padding=[(padding, padding)], dimension_numbers=("NCH", "OIH", "NCH"),
        precision=jax.lax.Precision.HIGHEST)
    y = y + params["daconv_b"][None, :, None]
    mean = jnp.mean(y, axis=(0, 2), keepdims=True)
    var = jnp.mean(jnp.square(y - mean), axis=(0, 2), keepdims=True)
    y = (y - mean) * jax.lax.rsqrt(var + _EPS)
    y = params["bn_g"][None, :, None] * y + params["bn_b"][None, :, None]
    return jnp.maximum(y, 0.0)


# --------------------------- main ---------------------------------------------

if __name__ == "__main__":
    # Small shapes consistent with the module: N=2, in_planes=4, sample_len=16,
    # places=16, Conv1 defaults kernel_size=7, stride=2, padding=3 -> out_len=8.
    sample_len, in_planes, places = 16, 4, 16
    kernel_size, stride, padding = 7, 2, 3

    key = jax.random.PRNGKey(0)
    k_params, k_x = jax.random.split(key)
    params = init_conv1_params(k_params, in_planes, places, kernel_size)
    x = jax.random.normal(k_x, (2, in_planes, sample_len), jnp.float32)

    out = conv1_forward(params, x, kernel_size=kernel_size, stride=stride,
                        padding=padding)
    out = jax.block_until_ready(out)

    out_len = (sample_len + 2 * padding - kernel_size) // stride + 1  # 8
    assert out.shape == (2, places, out_len), out.shape
    assert bool(jnp.all(out >= 0.0))  # ReLU

    ref = _reference(params, x, kernel_size=kernel_size, stride=stride,
                     padding=padding)
    max_err = float(jnp.max(jnp.abs(out - ref)))
    # Tolerance covers the deliberate bf16 quantization of the MXU operands
    # (f32 accumulation); the f32 reference uses HIGHEST precision.
    assert max_err < 1e-1, f"max abs err vs reference: {max_err}"

    print("KERNEL_OK")
</pallas_src>

<mosaic_0001>
module attributes {stable_mosaic.version = 11 : i64} {
  func.func @_daconv_bn_relu_kernel(%arg0: i32, %arg1: memref<28x128xbf16, #tpu.memory_space<vmem>>, %arg2: memref<16x28xbf16, #tpu.memory_space<vmem>>, %arg3: memref<16x1xf32, #tpu.memory_space<vmem>>, %arg4: memref<16x1xf32, #tpu.memory_space<vmem>>, %arg5: memref<16x128xf32, #tpu.memory_space<vmem>>) attributes {dimension_semantics = [#tpu.dimension_semantics<parallel>], iteration_bounds = array<i64: 1>, scalar_prefetch = 0 : i64, scratch_operands = 0 : i64, tpu.core_type = #tpu.core_type<tc>, window_params = [{pipeline_mode = #tpu.pipeline_mode<synchronous>, transform_indices = @transform_0, window_bounds = array<i64: 28, 128>}, {transform_indices = @transform_1, window_bounds = array<i64: 16, 28>}, {transform_indices = @transform_2, window_bounds = array<i64: 16, 1>}, {transform_indices = @transform_3, window_bounds = array<i64: 16, 1>}, {transform_indices = @transform_4, window_bounds = array<i64: 16, 128>}]} {
    %c0 = arith.constant 0 : index
    %c0_0 = arith.constant 0 : index
    %0 = vector.load %arg2[%c0, %c0_0] : memref<16x28xbf16, #tpu.memory_space<vmem>>, vector<16x28xbf16>
    %c0_1 = arith.constant 0 : index
    %c0_2 = arith.constant 0 : index
    %1 = vector.load %arg1[%c0_1, %c0_2] : memref<28x128xbf16, #tpu.memory_space<vmem>>, vector<28x128xbf16>
    %cst = arith.constant dense<0.000000e+00> : vector<16x128xf32>
    %2 = tpu.matmul %0, %1, %cst {dimension_numbers = #tpu.dot_dimension_numbers<[1], [0], [0], [1], [0, 0, 1, 1], [], []>} : vector<16x28xbf16>, vector<28x128xbf16>, vector<16x128xf32> -> vector<16x128xf32>
    %3 = tpu.iota {dimensions = array<i32: 1>} : vector<16x128xi32>
    %c16_i32 = arith.constant 16 : i32
    %4 = vector.broadcast %c16_i32 : i32 to vector<16x128xi32>
    %5 = arith.cmpi slt, %3, %4 : vector<16x128xi32>
    %cst_3 = arith.constant 0.000000e+00 : f32
    %6 = vector.broadcast %cst_3 : f32 to vector<16x128xf32>
    %7 = arith.select %5, %2, %6 : vector<16x128xi1>, vector<16x128xf32>
    %cst_4 = arith.constant dense<0.000000e+00> : vector<16xf32>
    %8 = vector.multi_reduction <add>, %7, %cst_4 [1] : vector<16x128xf32> to vector<16xf32>
    %9 = vector.shape_cast %8 : vector<16xf32> to vector<16x1xf32>
    %cst_5 = arith.constant 6.250000e-02 : f32
    %10 = vector.broadcast %cst_5 : f32 to vector<16x1xf32>
    %11 = arith.mulf %9, %10 : vector<16x1xf32>
    %12 = vector.broadcast %11 : vector<16x1xf32> to vector<16x128xf32>
    %13 = arith.subf %2, %12 : vector<16x128xf32>
    %cst_6 = arith.constant 0.000000e+00 : f32
    %14 = vector.broadcast %cst_6 : f32 to vector<16x128xf32>
    %15 = arith.select %5, %13, %14 : vector<16x128xi1>, vector<16x128xf32>
    %16 = arith.mulf %15, %15 : vector<16x128xf32>
    %cst_7 = arith.constant dense<0.000000e+00> : vector<16xf32>
    %17 = vector.multi_reduction <add>, %16, %cst_7 [1] : vector<16x128xf32> to vector<16xf32>
    %18 = vector.shape_cast %17 : vector<16xf32> to vector<16x1xf32>
    %cst_8 = arith.constant 6.250000e-02 : f32
    %19 = vector.broadcast %cst_8 : f32 to vector<16x1xf32>
    %20 = arith.mulf %18, %19 : vector<16x1xf32>
    %c0_9 = arith.constant 0 : index
    %c0_10 = arith.constant 0 : index
    %21 = vector.load %arg3[%c0_9, %c0_10] : memref<16x1xf32, #tpu.memory_space<vmem>>, vector<16x1xf32>
    %cst_11 = arith.constant 9.99999974E-6 : f32
    %22 = vector.broadcast %cst_11 : f32 to vector<16x1xf32>
    %23 = arith.addf %20, %22 : vector<16x1xf32>
    %24 = math.rsqrt %23 : vector<16x1xf32>
    %25 = arith.mulf %21, %24 : vector<16x1xf32>
    %c0_12 = arith.constant 0 : index
    %c0_13 = arith.constant 0 : index
    %26 = vector.load %arg4[%c0_12, %c0_13] : memref<16x1xf32, #tpu.memory_space<vmem>>, vector<16x1xf32>
    %27 = arith.mulf %11, %25 : vector<16x1xf32>
    %28 = arith.subf %26, %27 : vector<16x1xf32>
    %29 = vector.broadcast %25 : vector<16x1xf32> to vector<16x128xf32>
    %30 = arith.mulf %2, %29 : vector<16x128xf32>
    %31 = vector.broadcast %28 : vector<16x1xf32> to vector<16x128xf32>
    %32 = arith.addf %30, %31 : vector<16x128xf32>
    %cst_14 = arith.constant 0.000000e+00 : f32
    %33 = vector.broadcast %cst_14 : f32 to vector<16x128xf32>
    %34 = arith.maximumf %32, %33 : vector<16x128xf32>
    %c0_15 = arith.constant 0 : index
    %c0_16 = arith.constant 0 : index
    %35 = vector.load %arg5[%c0_15, %c0_16] : memref<16x128xf32, #tpu.memory_space<vmem>>, vector<16x128xf32>
    tpu.vector_store %arg5[%c0_15, %c0_16], %34 {strides = array<i32>} : memref<16x128xf32, #tpu.memory_space<vmem>>, vector<16x128xf32>,
    return
  }
  func.func @transform_0(%arg0: i32) -> (i32, i32) {
    %c0_i32 = arith.constant 0 : i32
    %c0_i32_0 = arith.constant 0 : i32
    %c0_i32_1 = arith.constant 0 : i32
    return %c0_i32, %c0_i32_0 : i32, i32
  }
  func.func @transform_1(%arg0: i32) -> (i32, i32) {
    %c0_i32 = arith.constant 0 : i32
    %c0_i32_0 = arith.constant 0 : i32
    return %arg0, %c0_i32 : i32, i32
  }
  func.func @transform_2(%arg0: i32) -> (i32, i32) {
    %c0_i32 = arith.constant 0 : i32
    %c0_i32_0 = arith.constant 0 : i32
    return %arg0, %c0_i32 : i32, i32
  }
  func.func @transform_3(%arg0: i32) -> (i32, i32) {
    %c0_i32 = arith.constant 0 : i32
    %c0_i32_0 = arith.constant 0 : i32
    return %arg0, %c0_i32 : i32, i32
  }
  func.func @transform_4(%arg0: i32) -> (i32, i32) {
    %c0_i32 = arith.constant 0 : i32
    %c0_i32_0 = arith.constant 0 : i32
    return %arg0, %c0_i32 : i32, i32
  }
}

</mosaic_0001>

<llo_original>
// kernel: tpu_custom_call.1
$region0: #{tpu_custom_call.1}
  #allocation0 [shape = 'u32[]', space=smem, size = 0x4, offset = 0x4, fixed_abs, tag = 'smem constant byte address 0x4 - core index']
  #allocation1 [shape = 'u32[72,128]{1,0:T(1,128)}', space=vmem, size = 0x9000, scoped, tag = 'internal scratch']
  %s0 = inlined_call_operand.vmem [shape: bf16[28,128], index: 0, kind: input, shape index: {}]
  %s1 = inlined_call_operand.vmem [shape: bf16[16,28], index: 1, kind: input, shape index: {}]
  %s2 = inlined_call_operand.vmem [shape: f32[16,1], index: 2, kind: input, shape index: {}]
  %s3 = inlined_call_operand.vmem [shape: f32[16,1], index: 3, kind: input, shape index: {}]
  %s4 = inlined_call_operand.hbm [shape: f32[16,128], index: 4, kind: output, shape index: {}]
  %s5 = sld [smem:[#allocation0]]
  $region26: #{tpu_custom_call.1} parent=0
    _
  %s7 = ssub.s32 1, %s5
  %s8 = scalar_select 0, %s7, %s5
  $region1: #{tpu_custom_call.1} parent=0
    #allocation2 [shape = 'u8[8192]{0}', space=vmem, size = 0x2000, scoped, tag = 'output window, operand 0, single buffered']
    #allocation3 [shape = 's32[1]{0}', space=sflag, size = 0x4, scoped, tag = 'scoped memory for tpu_custom_call.1']
    %9 = vsyncpa [#allocation3], 0
    // Predicated region
    $region2: #{tpu_custom_call.1} parent=1 // pred_check
      _
    $region3: #{tpu_custom_call.1} parent=1 // pred_check_branch
      %11 = sbr.rel (0) target = $region5
    $region4: #{tpu_custom_call.1} parent=1 // pred_region
      _
    $region5: #{tpu_custom_call.1} parent=1 // pred_fallthru
      _
    // Predicated region
    $region6: #{tpu_custom_call.1} parent=1 // pred_check
      _
    $region7: #{tpu_custom_call.1} parent=1 // pred_check_branch
      %13 = sbr.rel (0) target = $region9
    $region8: #{tpu_custom_call.1} parent=1 // pred_region
      _
    $region9: #{tpu_custom_call.1} parent=1 // pred_fallthru
      _
    // Predicated region
    $region10: #{tpu_custom_call.1} parent=1 // pred_check
      _
    $region11: #{tpu_custom_call.1} parent=1 // pred_check_branch
      %15 = sbr.rel (0) target = $region13
    $region12: #{tpu_custom_call.1} parent=1 // pred_region
      _
    $region13: #{tpu_custom_call.1} parent=1 // pred_fallthru
      _
    // Predicated region
    $region14: #{tpu_custom_call.1} parent=1 // pred_check
      _
    $region15: #{tpu_custom_call.1} parent=1 // pred_check_branch
      %17 = sbr.rel (0) target = $region17
    $region16: #{tpu_custom_call.1} parent=1 // pred_region
      _
    $region17: #{tpu_custom_call.1} parent=1 // pred_fallthru
      _
    %v19 = vld [vmem:[%s1] sm:$0xf]
    %v20 = vld [vmem:[%s1 + $0x4] sm:$0xf]
    %v21 = vld [vmem:[%s0] sm:$0xf]
    %v22 = vld [vmem:[%s0 + $0x4] sm:$0xf]
    %v23 = vld [vmem:[%s0 + $0x8] sm:$0xf]
    %v24 = vld [vmem:[%s0 + $0xc] sm:$0x3]
    %v27 = vunpack.c.l.b16 %v19
    %v28 = vunpack.c.l.b16 %v20
    %v29 = vpack.c.b16 %v28, %v27
    %v34 = vunpack.c.l.b16 %v21
    %v35 = vunpack.c.l.b16 %v22
    %v36 = vunpack.c.l.b16 %v23
    %v37 = vunpack.c.l.b16 %v24
    %v38 = vpack.c.b16 %v35, %v34
    %v39 = vpack.c.b16 %v37, %v36
    %vm41 = vcmask 228352
    %v43 = vsel %vm41, %v29, 0
    %vm45 = vcmask 1045504
    %v47 = vsel %vm45, %v39, 0
    %49 = vmatpush.bf16.msra.mxu0 0
    %50 = vmatpush.bf16.msra.mxu0 0
    %51 = vmatpush.bf16.msra.mxu0 0
    %52 = vmatpush.bf16.msra.mxu0 0
    %53 = vmatpush.bf16.msra.mxu0 0
    %54 = vmatpush.bf16.msra.mxu0 0
    %55 = vmatpush.bf16.msra.mxu0 %v47
    %56 = vmatpush.bf16.msra.mxu0 %v38
    %57 = vmatmul.bf16.gmra.mxu0 %v43
    %v58 = vpop.f32.mrf.mxu0
    %v59 = vadd.f32 0.0, %v58
    %v60 = vpop.f32.mrf.mxu0
    %v61 = vadd.f32 0.0, %v60
    %62 = vdwg.mxu0
    %v63 = vlaneseq
    %v64 = vand.u32 %v63, 127
    %vm65 = vcmp.lt.s32.totalorder %v64, 16
    %v66 = vsel %vm65, %v59, 0.0
    %v67 = vsel %vm65, %v61, 0.0
    %68 = vadd.xlane.f32.xlu0 %v66
    %v69 = vpop.xlane.xlu0 %68
    %70 = vadd.xlane.f32.xlu0 %v67
    %v71 = vpop.xlane.xlu0 %70
    %v72 = vmul.f32 %v69, 0.0625
    %v73 = vmul.f32 %v71, 0.0625
    %v74 = vsub.f32 %v59, %v72
    %v75 = vsub.f32 %v61, %v73
    %v76 = vsel %vm65, %v74, 0.0
    %v77 = vsel %vm65, %v75, 0.0
    %v78 = vmul.f32 %v76, %v76
    %v79 = vmul.f32 %v77, %v77
    %80 = vadd.xlane.f32.xlu0 %v78
    %v81 = vpop.xlane.xlu0 %80
    %82 = vadd.xlane.f32.xlu0 %v79
    %v83 = vpop.xlane.xlu0 %82
    %v84 = vmul.f32 %v81, 0.0625
    %v85 = vmul.f32 %v83, 0.0625
    %v86 = vld [vmem:[%s2] sm:$0xff]
    %v87 = vld [vmem:[%s2 + $0x8] sm:$0xff]
    %v88 = vadd.f32 %v84, 1e-05
    %v89 = vadd.f32 %v85, 1e-05
    %v90 = vrsqrt.pop %v88
    %v91 = vmul.f32 %v90, %v88
    %v92 = vmul.f32 %v91, %v90
    %v93 = vmul.f32 0.5, %v92
    %v94 = vsub.f32 1.5, %v93
    %v95 = vmul.f32 %v90, %v94
    %vm96 = vweird.f32 %v88
    %vm97 = vweird.f32 %v90
    %vm98 = vmor %vm96, %vm97
    %v99 = vsel %vm98, %v90, %v95
    %v100 = vrsqrt.pop %v89
    %v101 = vmul.f32 %v100, %v89
    %v102 = vmul.f32 %v101, %v100
    %v103 = vmul.f32 0.5, %v102
    %v104 = vsub.f32 1.5, %v103
    %v105 = vmul.f32 %v100, %v104
    %vm106 = vweird.f32 %v89
    %vm107 = vweird.f32 %v100
    %vm108 = vmor %vm106, %vm107
    %v109 = vsel %vm108, %v100, %v105
    %v110 = vmul.f32 %v86, %v99
    %v111 = vmul.f32 %v87, %v109
    %v112 = vld [vmem:[%s3] sm:$0xff]
    %v113 = vld [vmem:[%s3 + $0x8] sm:$0xff]
    %v114 = vmul.f32 %v72, %v110
    %v115 = vmul.f32 %v73, %v111
    %v116 = vsub.f32 %v112, %v114
    %v117 = vsub.f32 %v113, %v115
    %119 = vset.pattern.permute.xlu0 0
    %120 = vperm.xlu0 %119, %v110
    %v121 = vpop.permute.xlu0 %120
    %124 = vset.pattern.permute.xlu0 0
    %125 = vperm.xlu0 %124, %v111
    %v126 = vpop.permute.xlu0 %125
    %v128 = vmul.f32 %v59, %v121
    %v129 = vmul.f32 %v61, %v126
    %131 = vset.pattern.permute.xlu0 0
    %132 = vperm.xlu0 %131, %v116
    %v133 = vpop.permute.xlu0 %132
    %136 = vset.pattern.permute.xlu0 0
    %137 = vperm.xlu0 %136, %v117
    %v138 = vpop.permute.xlu0 %137
    %v140 = vadd.f32 %v128, %v133
    %v141 = vadd.f32 %v129, %v138
    %v142 = vmax.f32 %v140, 0.0
    %v143 = vmax.f32 %v141, 0.0
    %144 = vst [vmem:[#allocation2] sm:$0xff] %v142
    %145 = vst [vmem:[#allocation2 + $0x8] sm:$0xff] %v143
    // Predicated region
    $region18: #{tpu_custom_call.1} parent=1 // pred_check
      _
    $region19: #{tpu_custom_call.1} parent=1 // pred_check_branch
      %147 = sbr.rel (0) target = $region21
    $region20: #{tpu_custom_call.1} parent=1 // pred_region
      %149 = vsyncadd [#allocation3], 0
      %s150 = sshll.u32 [#allocation2], 4
      %s151 = int_to_ptr.vmem [resolvable:$true] %s150
      %s152 = sshll.u32 %s4, 4
      %s153 = int_to_ptr.hbm [resolvable:$true] %s152
      %158 = dma.vmem_to_hbm [thread:$0]  %s151, 256, %s153, [#allocation3], 128, 128, 8
    $region21: #{tpu_custom_call.1} parent=1 // pred_fallthru
      _
    // Predicated region
    $region22: #{tpu_custom_call.1} parent=1 // pred_check
      _
    $region23: #{tpu_custom_call.1} parent=1 // pred_check_branch
      %160 = sbr.rel (0) target = $region25
    $region24: #{tpu_custom_call.1} parent=1 // pred_region
      %162 = dma.done [#allocation3], 256
    $region25: #{tpu_custom_call.1} parent=1 // pred_fallthru
      _
    %163 = vsyncpa [#allocation3], 1

</llo_original>
